<compile_context>
chip_gen: v5e
topology: v5e:2x2
jax: 0.10.0
libtpu: 0.0.40
codegen_flags: <defaults>
</compile_context>

<pallas_src>
import functools

import jax
import jax.numpy as jnp
from jax.experimental import pallas as pl
from jax.experimental.pallas import tpu as pltpu


# ---------------------------------------------------------------------------
# Propagation kernels: out = act(A_hat @ Z + b).
# The feature transform is hoisted to XLA; only the bandwidth-dominant
# adjacency propagation runs in Pallas.
# ---------------------------------------------------------------------------
def _gcn_prop_single_kernel(adj_ref, z_ref, b_ref, o_ref, *, relu):
    # Full-width adjacency strip: one MXU pass per row tile, no K reduction,
    # no accumulator scratch, no init/finalize branches.
    y = jnp.dot(adj_ref[...], z_ref[...], preferred_element_type=jnp.float32)
    y = y + b_ref[...]
    if relu:
        y = jnp.maximum(y, 0.0)
    o_ref[...] = y.astype(o_ref.dtype)


def _gcn_prop_tiled_kernel(adj_ref, z_ref, b_ref, o_ref, acc_ref, *, relu):
    k = pl.program_id(1)

    @pl.when(k == 0)
    def _init():
        acc_ref[...] = jnp.zeros_like(acc_ref)

    # bf16 MXU pass, f32 accumulation.
    acc_ref[...] += jnp.dot(adj_ref[...], z_ref[...],
                            preferred_element_type=jnp.float32)

    @pl.when(k == pl.num_programs(1) - 1)
    def _finalize():
        y = acc_ref[...] + b_ref[...]          # bias added once, in finalize
        if relu:
            y = jnp.maximum(y, 0.0)
        o_ref[...] = y.astype(o_ref.dtype)


def _gcn_propagate(adj, z, b, *, relu, out_dtype, tm, tk):
    """out = act(adj @ z + b). adj [N_p,N_p] bf16, z [N_p,F_p] bf16, b [1,F_p] f32."""
    n_p = adj.shape[0]
    f_out_p = z.shape[1]

    # Advisory cost hint (hoisted-transform flops: propagation only).
    flops = 2 * n_p * n_p * f_out_p
    bytes_accessed = (adj.size * adj.dtype.itemsize
                      + z.size * z.dtype.itemsize
                      + b.size * b.dtype.itemsize
                      + n_p * f_out_p * jnp.dtype(out_dtype).itemsize)
    cost = pl.CostEstimate(flops=flops, transcendentals=0,
                           bytes_accessed=bytes_accessed)

    if tk is None:
        # --- small/medium graph fast path: adjacency strip is full width. ---
        grid = (n_p // tm,)
        return pl.pallas_call(
            functools.partial(_gcn_prop_single_kernel, relu=relu),
            out_shape=jax.ShapeDtypeStruct((n_p, f_out_p), out_dtype),
            grid_spec=pltpu.PrefetchScalarGridSpec(
                num_scalar_prefetch=0,
                grid=grid,
                in_specs=[
                    pl.BlockSpec((tm, n_p), lambda i: (i, 0)),        # adj strip
                    pl.BlockSpec((n_p, f_out_p), lambda i: (0, 0)),   # Z (resident)
                    pl.BlockSpec((1, f_out_p), lambda i: (0, 0)),     # bias
                ],
                out_specs=pl.BlockSpec((tm, f_out_p), lambda i: (i, 0)),
            ),
            compiler_params=pltpu.CompilerParams(
                dimension_semantics=("parallel",),
                vmem_limit_bytes=48 * 1024 * 1024,
            ),
            cost_estimate=cost,
        )(adj, z, b)

    # --- large graph tiled K-reduction path. ---
    grid = (n_p // tm, n_p // tk)
    return pl.pallas_call(
        functools.partial(_gcn_prop_tiled_kernel, relu=relu),
        out_shape=jax.ShapeDtypeStruct((n_p, f_out_p), out_dtype),
        grid_spec=pltpu.PrefetchScalarGridSpec(
            num_scalar_prefetch=0,
            grid=grid,
            in_specs=[
                # Adjacency is the dominant HBM stream; triple-buffer it so the
                # output-writeback bubble at each row-tile boundary stays hidden
                # (cheap VMEM headroom; biggest relative win on v5e).
                pl.BlockSpec((tm, tk), lambda i, k: (i, k),
                             pipeline_mode=pl.Buffered(3)),
                pl.BlockSpec((tk, f_out_p), lambda i, k: (k, 0)),     # Z K-tile
                pl.BlockSpec((1, f_out_p), lambda i, k: (0, 0)),      # bias
            ],
            out_specs=pl.BlockSpec((tm, f_out_p), lambda i, k: (i, 0)),
            scratch_shapes=[pltpu.VMEM((tm, f_out_p), jnp.float32)],
        ),
        compiler_params=pltpu.CompilerParams(
            dimension_semantics=("parallel", "arbitrary"),
            # Steady-state working set at tm=1024, tk=2048, f_out_p=128:
            # 3x4 MiB adj + 2x0.5 MiB Z + 0.5 MiB acc + 2x0.5 MiB out ~= 15 MiB;
            # 48 MiB cap stays under v7x's 64 MiB physical VMEM.
            vmem_limit_bytes=48 * 1024 * 1024,
        ),
        cost_estimate=cost,
    )(adj, z, b)


# ---------------------------------------------------------------------------
# Wrapper glue.
# ---------------------------------------------------------------------------
def _round_up(n, m):
    return ((n + m - 1) // m) * m


def _pad2d(a, rows, cols):
    return jnp.pad(a, ((0, rows - a.shape[0]), (0, cols - a.shape[1])))


def _plan_tiles(n, tiles=None):
    """Return (n_p, tm, tk); tk=None selects the single-pass (no K grid) path."""
    if tiles is not None:
        tm, tk = tiles
        if tk is None:
            return _round_up(n, tm), tm, None
        assert max(tm, tk) % min(tm, tk) == 0, "tm/tk must divide each other"
        return _round_up(n, max(tm, tk)), tm, tk
    if n <= 1024:
        # Tiny graphs: pad only to the lane width (128), not to a big tile.
        n_p = _round_up(n, 128)
        tm = n_p if n_p <= 128 else n_p // 2   # >=2 row tiles -> both v7x TCs busy
        return n_p, tm, None
    if n <= 4096:
        # Whole-width adjacency strips still fit comfortably in VMEM.
        n_p = _round_up(n, 512)
        return n_p, 512, None
    # Large graphs: tiled K reduction with big tiles (kernel is HBM-bound;
    # large tiles amortize per-grid-step overhead and cut Z refetch N_p/tm).
    n_p = _round_up(n, 1024)
    tk = 2048 if n_p % 2048 == 0 else 1024
    return n_p, 1024, tk


def build_gcn_adjacency(edge_index, num_nodes):
    """edge_index [2, E] -> dense GCN-normalized adjacency A_hat (f32).

    For a static graph compute this once and pass it to encoder_forward via
    adj_hat= so the O(N^2) scatter/normalize isn't rebuilt every call.
    NOTE: duplicate edges collapse to weight 1 (PyG GCNConv counts them).
    """
    src, dst = edge_index[0], edge_index[1]
    adj = jnp.zeros((num_nodes, num_nodes), jnp.float32).at[dst, src].set(1.0)
    adj = adj + jnp.eye(num_nodes, dtype=jnp.float32)            # self-loops
    d_inv_sqrt = jax.lax.rsqrt(jnp.sum(adj, axis=1))
    return adj * d_inv_sqrt[:, None] * d_inv_sqrt[None, :]


def encoder_forward(x, edge_index, params, *, adj_hat=None, tiles=None):
    """x: [N, in_ch] f32, edge_index: [2, E] int32 -> (mu, logstd).

    adj_hat: optional precomputed GCN-normalized adjacency (static-graph cache).
    tiles:   optional (tm, tk) override; tk=None forces the single-pass path.
    """
    n, f_in = x.shape
    out_channels = params["wmu"].shape[1]

    if adj_hat is None:
        adj_hat = build_gcn_adjacency(edge_index, n)

    # --- pad to TPU-friendly (lane-dense) shapes ---
    n_p, tm, tk = _plan_tiles(n, tiles)
    f_in_p = _round_up(f_in, 128)
    h_p = _round_up(params["w1"].shape[1], 128)
    f_cat = 2 * out_channels
    f_cat_p = _round_up(f_cat, 128)

    adj_p = _pad2d(adj_hat, n_p, n_p).astype(jnp.bfloat16)
    x_p = _pad2d(x, n_p, f_in_p).astype(jnp.bfloat16)

    w1_p = _pad2d(params["w1"], f_in_p, h_p).astype(jnp.bfloat16)
    b1_p = _pad2d(params["b1"], 1, h_p).astype(jnp.float32)

    # Fuse mu/logstd branches: one transform + one propagation over Wmu|Wls.
    w_cat = jnp.concatenate([params["wmu"], params["wls"]], axis=1)
    b_cat = jnp.concatenate([params["bmu"], params["bls"]], axis=1)
    w_cat_p = _pad2d(w_cat, h_p, f_cat_p).astype(jnp.bfloat16)
    b_cat_p = _pad2d(b_cat, 1, f_cat_p).astype(jnp.float32)

    # Hoisted feature transforms: tiny XLA dots computed once, so the Pallas
    # kernels only stream the narrow (tk, f_out) Z tiles.
    z1 = jnp.dot(x_p, w1_p, preferred_element_type=jnp.float32).astype(jnp.bfloat16)
    h = _gcn_propagate(adj_p, z1, b1_p,
                       relu=True, out_dtype=jnp.bfloat16, tm=tm, tk=tk)

    z2 = jnp.dot(h, w_cat_p, preferred_element_type=jnp.float32).astype(jnp.bfloat16)
    slab = _gcn_propagate(adj_p, z2, b_cat_p,
                          relu=False, out_dtype=jnp.float32, tm=tm, tk=tk)

    mu = slab[:n, :out_channels]
    logstd = slab[:n, out_channels:f_cat]
    return mu, logstd


def init_params(key, in_channels, out_channels):
    hidden = 2 * out_channels
    k1, k2, k3 = jax.random.split(key, 3)

    def glorot(k, fan_in, fan_out):
        limit = jnp.sqrt(6.0 / (fan_in + fan_out))
        return jax.random.uniform(k, (fan_in, fan_out), jnp.float32, -limit, limit)

    return {
        "w1": glorot(k1, in_channels, hidden),
        "b1": jnp.zeros((1, hidden), jnp.float32),
        "wmu": glorot(k2, hidden, out_channels),
        "bmu": jnp.zeros((1, out_channels), jnp.float32),
        "wls": glorot(k3, hidden, out_channels),
        "bls": jnp.zeros((1, out_channels), jnp.float32),
    }


def _reference(x, edge_index, params):
    n = x.shape[0]
    src, dst = edge_index[0], edge_index[1]
    adj = jnp.zeros((n, n), jnp.float32).at[dst, src].set(1.0)
    adj = adj + jnp.eye(n, dtype=jnp.float32)
    d = jax.lax.rsqrt(jnp.sum(adj, axis=1))
    a = adj * d[:, None] * d[None, :]
    h = jnp.maximum(a @ (x @ params["w1"]) + params["b1"], 0.0)
    mu = a @ (h @ params["wmu"]) + params["bmu"]
    ls = a @ (h @ params["wls"]) + params["bls"]
    return mu, ls


def _make_graph(k_e, num_nodes, num_edges):
    src = jax.random.randint(k_e, (num_edges,), 0, num_nodes, jnp.int32)
    dst = jnp.roll(src, 1)
    return jnp.stack(
        [jnp.concatenate([src, dst]), jnp.concatenate([dst, src])], axis=0)


if __name__ == "__main__":
    key = jax.random.PRNGKey(0)
    k_x, k_e, k_p, k2_x, k2_e, k2_p = jax.random.split(key, 6)

    # --- Test 1: tiny graph -> small-graph fast path (single-pass kernel). ---
    num_nodes, in_channels, out_channels, num_edges = 16, 8, 4, 32
    x = jax.random.normal(k_x, (num_nodes, in_channels), jnp.float32)
    edge_index = _make_graph(k_e, num_nodes, num_edges)
    params = init_params(k_p, in_channels, out_channels)

    mu, logstd = encoder_forward(x, edge_index, params)
    jax.block_until_ready((mu, logstd))
    assert mu.shape == (num_nodes, out_channels)
    assert logstd.shape == (num_nodes, out_channels)
    mu_ref, ls_ref = _reference(x, edge_index, params)
    assert bool(jnp.allclose(mu, mu_ref, atol=5e-2, rtol=5e-2))
    assert bool(jnp.allclose(logstd, ls_ref, atol=5e-2, rtol=5e-2))

    # --- Test 2: larger graph with a tile override to exercise the tiled
    #     K-reduction path (accumulator + Buffered(3) adjacency stream) and
    #     the precomputed-adjacency (static-graph cache) entry point. ---
    n2, f2_in, f2_out, e2 = 512, 16, 8, 1024
    x2 = jax.random.normal(k2_x, (n2, f2_in), jnp.float32)
    edge_index2 = _make_graph(k2_e, n2, e2)
    params2 = init_params(k2_p, f2_in, f2_out)
    adj_hat2 = build_gcn_adjacency(edge_index2, n2)   # computed once, reused
    mu2, ls2 = encoder_forward(x2, edge_index2, params2,
                               adj_hat=adj_hat2, tiles=(256, 256))
    jax.block_until_ready((mu2, ls2))
    assert mu2.shape == (n2, f2_out)
    assert ls2.shape == (n2, f2_out)
    mu2_ref, ls2_ref = _reference(x2, edge_index2, params2)
    assert bool(jnp.allclose(mu2, mu2_ref, atol=5e-2, rtol=5e-2))
    assert bool(jnp.allclose(ls2, ls2_ref, atol=5e-2, rtol=5e-2))

    print("KERNEL_OK")
</pallas_src>

<mosaic_0001>
module attributes {stable_mosaic.version = 11 : i64} {
  func.func @_gcn_prop_single_kernel(%arg0: i32, %arg1: memref<128x128xbf16, #tpu.memory_space<vmem>>, %arg2: memref<128x128xbf16, #tpu.memory_space<vmem>>, %arg3: memref<1x128xf32, #tpu.memory_space<vmem>>, %arg4: memref<128x128xbf16, #tpu.memory_space<vmem>>) attributes {dimension_semantics = [#tpu.dimension_semantics<parallel>], iteration_bounds = array<i64: 1>, scalar_prefetch = 0 : i64, scratch_operands = 0 : i64, tpu.core_type = #tpu.core_type<tc>, window_params = [{transform_indices = @transform_0, window_bounds = array<i64: 128, 128>}, {pipeline_mode = #tpu.pipeline_mode<synchronous>, transform_indices = @transform_1, window_bounds = array<i64: 128, 128>}, {pipeline_mode = #tpu.pipeline_mode<synchronous>, transform_indices = @transform_2, window_bounds = array<i64: 1, 128>}, {transform_indices = @transform_3, window_bounds = array<i64: 128, 128>}]} {
    %c0 = arith.constant 0 : index
    %c0_0 = arith.constant 0 : index
    %0 = vector.load %arg1[%c0, %c0_0] : memref<128x128xbf16, #tpu.memory_space<vmem>>, vector<128x128xbf16>
    %c0_1 = arith.constant 0 : index
    %c0_2 = arith.constant 0 : index
    %1 = vector.load %arg2[%c0_1, %c0_2] : memref<128x128xbf16, #tpu.memory_space<vmem>>, vector<128x128xbf16>
    %cst = arith.constant dense<0.000000e+00> : vector<128x128xf32>
    %2 = tpu.matmul %0, %1, %cst {dimension_numbers = #tpu.dot_dimension_numbers<[1], [0], [0], [1], [0, 0, 1, 1], [], []>} : vector<128x128xbf16>, vector<128x128xbf16>, vector<128x128xf32> -> vector<128x128xf32>
    %c0_3 = arith.constant 0 : index
    %c0_4 = arith.constant 0 : index
    %3 = vector.load %arg3[%c0_3, %c0_4] : memref<1x128xf32, #tpu.memory_space<vmem>>, vector<1x128xf32>
    %4 = vector.broadcast %3 : vector<1x128xf32> to vector<128x128xf32>
    %5 = arith.addf %2, %4 : vector<128x128xf32>
    %cst_5 = arith.constant 0.000000e+00 : f32
    %6 = vector.broadcast %cst_5 : f32 to vector<128x128xf32>
    %7 = arith.maximumf %5, %6 : vector<128x128xf32>
    %8 = arith.truncf %7 : vector<128x128xf32> to vector<128x128xbf16>
    %c0_6 = arith.constant 0 : index
    %c0_7 = arith.constant 0 : index
    %9 = vector.load %arg4[%c0_6, %c0_7] : memref<128x128xbf16, #tpu.memory_space<vmem>>, vector<128x128xbf16>
    tpu.vector_store %arg4[%c0_6, %c0_7], %8 {strides = array<i32>} : memref<128x128xbf16, #tpu.memory_space<vmem>>, vector<128x128xbf16>,
    return
  }
  func.func @transform_0(%arg0: i32) -> (i32, i32) {
    %c0_i32 = arith.constant 0 : i32
    %c0_i32_0 = arith.constant 0 : i32
    return %arg0, %c0_i32 : i32, i32
  }
  func.func @transform_1(%arg0: i32) -> (i32, i32) {
    %c0_i32 = arith.constant 0 : i32
    %c0_i32_0 = arith.constant 0 : i32
    %c0_i32_1 = arith.constant 0 : i32
    return %c0_i32, %c0_i32_0 : i32, i32
  }
  func.func @transform_2(%arg0: i32) -> (i32, i32) {
    %c0_i32 = arith.constant 0 : i32
    %c0_i32_0 = arith.constant 0 : i32
    %c0_i32_1 = arith.constant 0 : i32
    return %c0_i32, %c0_i32_0 : i32, i32
  }
  func.func @transform_3(%arg0: i32) -> (i32, i32) {
    %c0_i32 = arith.constant 0 : i32
    %c0_i32_0 = arith.constant 0 : i32
    return %arg0, %c0_i32 : i32, i32
  }
}

</mosaic_0001>

<llo_original>
// kernel: tpu_custom_call.1
$region0: #{tpu_custom_call.1}
  #allocation0 [shape = 'u32[]', space=smem, size = 0x4, offset = 0x4, fixed_abs, tag = 'smem constant byte address 0x4 - core index']
  #allocation1 [shape = 'u32[72,128]{1,0:T(1,128)}', space=vmem, size = 0x9000, scoped, tag = 'internal scratch']
  %s0 = inlined_call_operand.hbm [shape: bf16[128,128], index: 0, kind: input, shape index: {}]
  %s1 = inlined_call_operand.hbm [shape: bf16[128,128], index: 1, kind: input, shape index: {}]
  %s2 = inlined_call_operand.vmem [shape: f32[1,128], index: 2, kind: input, shape index: {}]
  %s3 = inlined_call_operand.hbm [shape: bf16[128,128], index: 3, kind: output, shape index: {}]
  %s4 = sld [smem:[#allocation0]]
  $region30: #{tpu_custom_call.1} parent=0
    _
  %s6 = ssub.s32 1, %s4
  %s7 = scalar_select 0, %s6, %s4
  $region1: #{tpu_custom_call.1} parent=0
    #allocation2 [shape = 'u8[32768]{0}', space=vmem, size = 0x8000, scoped, tag = 'input window, operand 0, single buffered']
    #allocation3 [shape = 's32[1]{0}', space=sflag, size = 0x4, scoped, tag = 'scoped memory for tpu_custom_call.1']
    #allocation4 [shape = 's32[1]{0}', space=sflag, size = 0x4, scoped, tag = 'scoped memory for tpu_custom_call.1']
    #allocation5 [shape = 'u8[32768]{0}', space=vmem, size = 0x8000, scoped, tag = 'input window, operand 1, single buffered']
    #allocation6 [shape = 's32[1]{0}', space=sflag, size = 0x4, scoped, tag = 'scoped memory for tpu_custom_call.1']
    #allocation7 [shape = 'u8[32768]{0}', space=vmem, size = 0x8000, scoped, tag = 'output window, operand 0, single buffered']
    %8 = vsyncpa [#allocation3], 0
    %9 = vsyncpa [#allocation6], 0
    %10 = vsyncpa [#allocation4], 0
    // Predicated region
    $region2: #{tpu_custom_call.1} parent=1 // pred_check
      _
    $region3: #{tpu_custom_call.1} parent=1 // pred_check_branch
      %12 = sbr.rel (0) target = $region5
    $region4: #{tpu_custom_call.1} parent=1 // pred_region
      %14 = vsyncadd [#allocation3], 0
      %s15 = sshll.u32 %s0, 4
      %s16 = int_to_ptr.hbm [resolvable:$true] %s15
      %s17 = sshll.u32 [#allocation2], 4
      %s18 = int_to_ptr.vmem [resolvable:$true] %s17
      %23 = dma.hbm_to_vmem [thread:$0]  %s16, 1024, %s18, [#allocation3], 64, 64, 4
    $region5: #{tpu_custom_call.1} parent=1 // pred_fallthru
      _
    // Predicated region
    $region6: #{tpu_custom_call.1} parent=1 // pred_check
      _
    $region7: #{tpu_custom_call.1} parent=1 // pred_check_branch
      %25 = sbr.rel (0) target = $region9
    $region8: #{tpu_custom_call.1} parent=1 // pred_region
      %27 = vsyncadd [#allocation6], 0
      %s28 = sshll.u32 %s1, 4
      %s29 = int_to_ptr.hbm [resolvable:$true] %s28
      %s30 = sshll.u32 [#allocation5], 4
      %s31 = int_to_ptr.vmem [resolvable:$true] %s30
      %36 = dma.hbm_to_vmem [thread:$0]  %s29, 1024, %s31, [#allocation6], 64, 64, 4
    $region9: #{tpu_custom_call.1} parent=1 // pred_fallthru
      _
    // Predicated region
    $region10: #{tpu_custom_call.1} parent=1 // pred_check
      _
    $region11: #{tpu_custom_call.1} parent=1 // pred_check_branch
      %38 = sbr.rel (0) target = $region13
    $region12: #{tpu_custom_call.1} parent=1 // pred_region
      _
    $region13: #{tpu_custom_call.1} parent=1 // pred_fallthru
      _
    // Predicated region
    $region14: #{tpu_custom_call.1} parent=1 // pred_check
      _
    $region15: #{tpu_custom_call.1} parent=1 // pred_check_branch
      %40 = sbr.rel (0) target = $region17
    $region16: #{tpu_custom_call.1} parent=1 // pred_region
      %42 = dma.done [#allocation3], 1024
    $region17: #{tpu_custom_call.1} parent=1 // pred_fallthru
      _
    // Predicated region
    $region18: #{tpu_custom_call.1} parent=1 // pred_check
      _
    $region19: #{tpu_custom_call.1} parent=1 // pred_check_branch
      %44 = sbr.rel (0) target = $region21
    $region20: #{tpu_custom_call.1} parent=1 // pred_region
      %46 = dma.done [#allocation6], 1024
    $region21: #{tpu_custom_call.1} parent=1 // pred_fallthru
      _
    %v47 = vld [vmem:[#allocation2] sm:$0xf]
    %v48 = vld [vmem:[#allocation2 + $0x4] sm:$0xf]
    %v49 = vld [vmem:[#allocation2 + $0x8] sm:$0xf]
    %v50 = vld [vmem:[#allocation2 + $0xc] sm:$0xf]
    %v51 = vld [vmem:[#allocation2 + $0x10] sm:$0xf]
    %v52 = vld [vmem:[#allocation2 + $0x14] sm:$0xf]
    %v53 = vld [vmem:[#allocation2 + $0x18] sm:$0xf]
    %v54 = vld [vmem:[#allocation2 + $0x1c] sm:$0xf]
    %v55 = vld [vmem:[#allocation2 + $0x20] sm:$0xf]
    %v56 = vld [vmem:[#allocation2 + $0x24] sm:$0xf]
    %v57 = vld [vmem:[#allocation2 + $0x28] sm:$0xf]
    %v58 = vld [vmem:[#allocation2 + $0x2c] sm:$0xf]
    %v59 = vld [vmem:[#allocation2 + $0x30] sm:$0xf]
    %v60 = vld [vmem:[#allocation2 + $0x34] sm:$0xf]
    %v61 = vld [vmem:[#allocation2 + $0x38] sm:$0xf]
    %v62 = vld [vmem:[#allocation2 + $0x3c] sm:$0xf]
    %v63 = vld [vmem:[#allocation5] sm:$0xf]
    %v64 = vld [vmem:[#allocation5 + $0x4] sm:$0xf]
    %v65 = vld [vmem:[#allocation5 + $0x8] sm:$0xf]
    %v66 = vld [vmem:[#allocation5 + $0xc] sm:$0xf]
    %v67 = vld [vmem:[#allocation5 + $0x10] sm:$0xf]
    %v68 = vld [vmem:[#allocation5 + $0x14] sm:$0xf]
    %v69 = vld [vmem:[#allocation5 + $0x18] sm:$0xf]
    %v70 = vld [vmem:[#allocation5 + $0x1c] sm:$0xf]
    %v71 = vld [vmem:[#allocation5 + $0x20] sm:$0xf]
    %v72 = vld [vmem:[#allocation5 + $0x24] sm:$0xf]
    %v73 = vld [vmem:[#allocation5 + $0x28] sm:$0xf]
    %v74 = vld [vmem:[#allocation5 + $0x2c] sm:$0xf]
    %v75 = vld [vmem:[#allocation5 + $0x30] sm:$0xf]
    %v76 = vld [vmem:[#allocation5 + $0x34] sm:$0xf]
    %v77 = vld [vmem:[#allocation5 + $0x38] sm:$0xf]
    %v78 = vld [vmem:[#allocation5 + $0x3c] sm:$0xf]
    %v79 = vld [vmem:[%s2] sm:$0x1]
    %v81 = vperm.slane %v79, 0
    %v99 = vunpack.c.l.b16 %v47
    %v100 = vunpack.c.l.b16 %v48
    %v101 = vunpack.c.l.b16 %v49
    %v102 = vunpack.c.l.b16 %v50
    %v103 = vunpack.c.l.b16 %v51
    %v104 = vunpack.c.l.b16 %v52
    %v105 = vunpack.c.l.b16 %v53
    %v106 = vunpack.c.l.b16 %v54
    %v107 = vunpack.c.l.b16 %v55
    %v108 = vunpack.c.l.b16 %v56
    %v109 = vunpack.c.l.b16 %v57
    %v110 = vunpack.c.l.b16 %v58
    %v111 = vunpack.c.l.b16 %v59
    %v112 = vunpack.c.l.b16 %v60
    %v113 = vunpack.c.l.b16 %v61
    %v114 = vunpack.c.l.b16 %v62
    %v115 = vpack.c.b16 %v100, %v99
    %v116 = vpack.c.b16 %v102, %v101
    %v117 = vpack.c.b16 %v104, %v103
    %v118 = vpack.c.b16 %v106, %v105
    %v119 = vpack.c.b16 %v108, %v107
    %v120 = vpack.c.b16 %v110, %v109
    %v121 = vpack.c.b16 %v112, %v111
    %v122 = vpack.c.b16 %v114, %v113
    %v147 = vunpack.c.l.b16 %v63
    %v148 = vunpack.c.l.b16 %v64
    %v149 = vunpack.c.l.b16 %v65
    %v150 = vunpack.c.l.b16 %v66
    %v151 = vunpack.c.l.b16 %v67
    %v152 = vunpack.c.l.b16 %v68
    %v153 = vunpack.c.l.b16 %v69
    %v154 = vunpack.c.l.b16 %v70
    %v155 = vunpack.c.l.b16 %v71
    %v156 = vunpack.c.l.b16 %v72
    %v157 = vunpack.c.l.b16 %v73
    %v158 = vunpack.c.l.b16 %v74
    %v159 = vunpack.c.l.b16 %v75
    %v160 = vunpack.c.l.b16 %v76
    %v161 = vunpack.c.l.b16 %v77
    %v162 = vunpack.c.l.b16 %v78
    %v163 = vpack.c.b16 %v148, %v147
    %v164 = vpack.c.b16 %v150, %v149
    %v165 = vpack.c.b16 %v152, %v151
    %v166 = vpack.c.b16 %v154, %v153
    %v167 = vpack.c.b16 %v156, %v155
    %v168 = vpack.c.b16 %v158, %v157
    %v169 = vpack.c.b16 %v160, %v159
    %v170 = vpack.c.b16 %v162, %v161
    %179 = vmatpush.bf16.msra.mxu0 %v170
    %180 = vmatpush.bf16.msra.mxu0 %v169
    %181 = vmatpush.bf16.msra.mxu0 %v168
    %182 = vmatpush.bf16.msra.mxu0 %v167
    %183 = vmatpush.bf16.msra.mxu0 %v166
    %184 = vmatpush.bf16.msra.mxu0 %v165
    %185 = vmatpush.bf16.msra.mxu0 %v164
    %186 = vmatpush.bf16.msra.mxu0 %v163
    %187 = vmatmul.bf16.gmra.mxu0 %v115
    %v188 = vpop.f32.mrf.mxu0
    %v189 = vadd.f32 %v81, %v188
    %v190 = vpop.f32.mrf.mxu0
    %v191 = vadd.f32 %v81, %v190
    %192 = vmatmul.bf16.gmra.mxu0 %v116
    %v193 = vpop.f32.mrf.mxu0
    %v194 = vadd.f32 %v81, %v193
    %v195 = vpop.f32.mrf.mxu0
    %v196 = vadd.f32 %v81, %v195
    %197 = vmatmul.bf16.gmra.mxu0 %v117
    %v198 = vpop.f32.mrf.mxu0
    %v199 = vadd.f32 %v81, %v198
    %v200 = vpop.f32.mrf.mxu0
    %v201 = vadd.f32 %v81, %v200
    %202 = vmatmul.bf16.gmra.mxu0 %v118
    %v203 = vpop.f32.mrf.mxu0
    %v204 = vadd.f32 %v81, %v203
    %v205 = vpop.f32.mrf.mxu0
    %v206 = vadd.f32 %v81, %v205
    %207 = vmatmul.bf16.gmra.mxu0 %v119
    %v208 = vpop.f32.mrf.mxu0
    %v209 = vadd.f32 %v81, %v208
    %v210 = vpop.f32.mrf.mxu0
    %v211 = vadd.f32 %v81, %v210
    %212 = vmatmul.bf16.gmra.mxu0 %v120
    %v213 = vpop.f32.mrf.mxu0
    %v214 = vadd.f32 %v81, %v213
    %v215 = vpop.f32.mrf.mxu0
    %v216 = vadd.f32 %v81, %v215
    %217 = vmatmul.bf16.gmra.mxu0 %v121
    %v218 = vpop.f32.mrf.mxu0
    %v219 = vadd.f32 %v81, %v218
    %v220 = vpop.f32.mrf.mxu0
    %v221 = vadd.f32 %v81, %v220
    %222 = vmatmul.bf16.gmra.mxu0 %v122
    %v223 = vpop.f32.mrf.mxu0
    %v224 = vadd.f32 %v81, %v223
    %v225 = vpop.f32.mrf.mxu0
    %v226 = vadd.f32 %v81, %v225
    %227 = vdwg.mxu0
    %v228 = vmax.f32 %v189, 0.0
    %v229 = vmax.f32 %v191, 0.0
    %v230 = vmax.f32 %v194, 0.0
    %v231 = vmax.f32 %v196, 0.0
    %v232 = vmax.f32 %v199, 0.0
    %v233 = vmax.f32 %v201, 0.0
    %v234 = vmax.f32 %v204, 0.0
    %v235 = vmax.f32 %v206, 0.0
    %v236 = vmax.f32 %v209, 0.0
    %v237 = vmax.f32 %v211, 0.0
    %v238 = vmax.f32 %v214, 0.0
    %v239 = vmax.f32 %v216, 0.0
    %v240 = vmax.f32 %v219, 0.0
    %v241 = vmax.f32 %v221, 0.0
    %v242 = vmax.f32 %v224, 0.0
    %v243 = vmax.f32 %v226, 0.0
    %v244 = vpack.c.bf16 %v228, %v228
    %v245 = vpack.c.bf16 %v229, %v229
    %v246 = vpack.c.bf16 %v230, %v230
    %v247 = vpack.c.bf16 %v231, %v231
    %v248 = vpack.c.bf16 %v232, %v232
    %v249 = vpack.c.bf16 %v233, %v233
    %v250 = vpack.c.bf16 %v234, %v234
    %v251 = vpack.c.bf16 %v235, %v235
    %v252 = vpack.c.bf16 %v236, %v236
    %v253 = vpack.c.bf16 %v237, %v237
    %v254 = vpack.c.bf16 %v238, %v238
    %v255 = vpack.c.bf16 %v239, %v239
    %v256 = vpack.c.bf16 %v240, %v240
    %v257 = vpack.c.bf16 %v241, %v241
    %v258 = vpack.c.bf16 %v242, %v242
    %v259 = vpack.c.bf16 %v243, %v243
    %260 = vst [vmem:[#allocation7] sm:$0xf] %v244
    %261 = vst [vmem:[#allocation7 + $0x4] sm:$0xf] %v245
    %262 = vst [vmem:[#allocation7 + $0x8] sm:$0xf] %v246
    %263 = vst [vmem:[#allocation7 + $0xc] sm:$0xf] %v247
    %264 = vst [vmem:[#allocation7 + $0x10] sm:$0xf] %v248
    %265 = vst [vmem:[#allocation7 + $0x14] sm:$0xf] %v249
    %266 = vst [vmem:[#allocation7 + $0x18] sm:$0xf] %v250
    %267 = vst [vmem:[#allocation7 + $0x1c] sm:$0xf] %v251
    %268 = vst [vmem:[#allocation7 + $0x20] sm:$0xf] %v252
    %269 = vst [vmem:[#allocation7 + $0x24] sm:$0xf] %v253
    %270 = vst [vmem:[#allocation7 + $0x28] sm:$0xf] %v254
    %271 = vst [vmem:[#allocation7 + $0x2c] sm:$0xf] %v255
    %272 = vst [vmem:[#allocation7 + $0x30] sm:$0xf] %v256
    %273 = vst [vmem:[#allocation7 + $0x34] sm:$0xf] %v257
    %274 = vst [vmem:[#allocation7 + $0x38] sm:$0xf] %v258
    %275 = vst [vmem:[#allocation7 + $0x3c] sm:$0xf] %v259
    // Predicated region
    $region22: #{tpu_custom_call.1} parent=1 // pred_check
      _
    $region23: #{tpu_custom_call.1} parent=1 // pred_check_branch
      %277 = sbr.rel (0) target = $region25
    $region24: #{tpu_custom_call.1} parent=1 // pred_region
      %279 = vsyncadd [#allocation4], 0
      %s280 = sshll.u32 [#allocation7], 4
      %s281 = int_to_ptr.vmem [resolvable:$true] %s280
      %s282 = sshll.u32 %s3, 4
      %s283 = int_to_ptr.hbm [resolvable:$true] %s282
      %288 = dma.vmem_to_hbm [thread:$0]  %s281, 1024, %s283, [#allocation4], 64, 64, 4
    $region25: #{tpu_custom_call.1} parent=1 // pred_fallthru
      _
    // Predicated region
    $region26: #{tpu_custom_call.1} parent=1 // pred_check
      _
    $region27: #{tpu_custom_call.1} parent=1 // pred_check_branch
      %290 = sbr.rel (0) target = $region29
    $region28: #{tpu_custom_call.1} parent=1 // pred_region
      %292 = dma.done [#allocation4], 1024
    $region29: #{tpu_custom_call.1} parent=1 // pred_fallthru
      _
    %293 = vsyncpa [#allocation3], 1
    %294 = vsyncpa [#allocation6], 1
    %295 = vsyncpa [#allocation4], 1

</llo_original>
